<compile_context>
chip_gen: v7x
topology: tpu7x:2x2x1
jax: 0.10.0
libtpu: 0.0.40
codegen_flags: <defaults>
</compile_context>

<pallas_src>
import functools

import jax
import jax.numpy as jnp
from jax.experimental import pallas as pl
from jax.experimental.pallas import tpu as pltpu


def _round_up(n, m):
    return ((n + m - 1) // m) * m


def _tpu_topology():
    """Best-effort (VMEM capacity bytes, #TensorCores per device)."""
    kind = ""
    try:
        kind = jax.devices()[0].device_kind.lower()
    except Exception:  # pragma: no cover - defensive
        pass
    vmem_cap = None
    try:
        info = pltpu.get_tpu_info()
        vmem_cap = getattr(info, "vmem_capacity_bytes", None)
    except Exception:  # pragma: no cover - e.g. non-TPU tracing
        pass
    if vmem_cap is None:
        vmem_cap = (64 << 20) if "v7" in kind else (128 << 20)
    # v5e / v6e ("lite" chips) expose a single TensorCore; v4/v5p/v7x have 2.
    single_tc = ("lite" in kind) or ("v5e" in kind) or ("v6e" in kind)
    num_tc = 1 if single_tc else 2
    return int(vmem_cap), num_tc


# ----------------------------- Pallas RMSNorm -----------------------------

def _rmsnorm_kernel(x_ref, w_ref, o_ref, *, eps, cast_dtype):
    # x_ref: (ROW_TILE, DIM), w_ref: (1, DIM), o_ref: (ROW_TILE, DIM)
    x = x_ref[...].astype(jnp.float32)                 # x.float()
    ms = jnp.mean(x * x, axis=-1, keepdims=True)       # pow(2).mean(-1, keepdim)
    inv = jax.lax.rsqrt(ms + eps)                      # torch.rsqrt(. + eps)
    # Match torch exactly: normed is rounded back to x's dtype (.type_as(x))
    # BEFORE the f32 weight multiply.  For f32 inputs these casts are no-ops.
    normed = (x * inv).astype(cast_dtype).astype(jnp.float32)
    w = w_ref[...].astype(jnp.float32)
    o_ref[...] = (w * normed).astype(o_ref.dtype)


def rmsnorm_pallas(x, weight, eps=1e-6, row_tile=None, out_dtype=None,
                   small_rows_threshold=256):
    """RMSNorm over the last axis of x with a Pallas TPU kernel.

    x: [..., dim]   weight: [dim]
    out_dtype=None keeps torch semantics (result_type(x, weight));
    pass x.dtype to halve writeback bytes on bf16 inputs if f32 output is
    not required downstream.
    """
    orig_shape = x.shape
    dim = orig_shape[-1]
    rows = 1
    for s in orig_shape[:-1]:
        rows *= s

    # Torch: weight(f32) * normed.type_as(x) -> promoted result dtype.
    if out_dtype is None:
        out_dtype = jnp.result_type(x.dtype, weight.dtype)
    in_itemsize = jnp.dtype(x.dtype).itemsize
    out_itemsize = jnp.dtype(out_dtype).itemsize

    # ---- Small-input fast path: let XLA fuse decode-sized norms with their
    # neighbors instead of paying an un-fusable custom-call boundary. ----
    if rows < small_rows_threshold:
        x32 = x.astype(jnp.float32)
        normed = x32 * jax.lax.rsqrt(jnp.mean(x32 * x32, -1, keepdims=True) + eps)
        return (weight.astype(jnp.float32) *
                normed.astype(x.dtype).astype(jnp.float32)).astype(out_dtype)

    x2d = x.reshape(rows, dim)
    w2d = weight.reshape(1, dim)

    vmem_cap, num_tc = _tpu_topology()

    # ---- Row-tile selection (purely memory-bound; biggest safe tile). ----
    sub = 8 if in_itemsize >= 4 else (16 if in_itemsize == 2 else 32)
    if row_tile is None:
        # 1024x1024 f32 block = 4 MiB; double-buffered in+out ~16 MiB, inside
        # every generation's scoped VMEM once the limit is raised (and well
        # inside v7x's 64 MiB physical).  Pure bf16 in/out can go to 2048.
        row_tile = 2048 if (in_itemsize <= 2 and out_itemsize <= 2) else 1024
    row_tile = max(sub, _round_up(row_tile, sub))

    if num_tc >= 2:
        # Keep >= 4 grid steps when rows are only moderately larger than the
        # tile so the 2 TensorCores stay balanced even with a ragged tail.
        # (When rows >= 4*row_tile this cap is a no-op.)
        cap_rows = _round_up(max(pl.cdiv(rows, 4), 1), sub)
    else:
        # Single-TC chip: never force a split, one big block is best.
        cap_rows = _round_up(rows, sub)
    row_tile = max(sub, min(row_tile, cap_rows))

    # ---- VMEM budget: never request more scoped VMEM than the chip has. ----
    def _block_bytes(rt):
        # double-buffered input + output tiles, plus the resident weight.
        return 2 * rt * dim * (in_itemsize + out_itemsize) + 2 * dim * 4

    vmem_budget = max(vmem_cap - (16 << 20), 16 << 20)   # leave headroom
    while row_tile > sub and _block_bytes(row_tile) > vmem_budget:
        row_tile = max(sub, _round_up(row_tile // 2, sub))

    grid = pl.cdiv(rows, row_tile)
    est_vmem = _block_bytes(row_tile)

    compiler_kwargs = dict(
        dimension_semantics=("parallel",),
        # Let XLA fuse the (elementwise) producer of x into the kernel so the
        # final decoder-layer epilogue does not cost an extra HBM pass.
        # (If the producer is not fusable XLA simply ignores this.)
        allow_input_fusion=[True, False],
    )
    if est_vmem > (16 << 20):
        compiler_kwargs["vmem_limit_bytes"] = min(
            int(est_vmem * 3 // 2), min(100 << 20, vmem_budget))

    kernel = functools.partial(_rmsnorm_kernel, eps=eps, cast_dtype=x.dtype)
    out = pl.pallas_call(
        kernel,
        out_shape=jax.ShapeDtypeStruct((rows, dim), out_dtype),
        grid_spec=pltpu.PrefetchScalarGridSpec(
            num_scalar_prefetch=0,
            grid=(grid,),
            in_specs=[
                pl.BlockSpec((row_tile, dim), lambda i: (i, 0)),
                pl.BlockSpec((1, dim), lambda i: (0, 0)),  # weight stays resident
            ],
            out_specs=pl.BlockSpec((row_tile, dim), lambda i: (i, 0)),
        ),
        compiler_params=pltpu.CompilerParams(**compiler_kwargs),
    )(x2d, w2d)

    return out.reshape(orig_shape[:-1] + (dim,))


# ------------------------------ Decoder glue ------------------------------

class DecoderPallas:
    """Mirror of the PyTorch Decoder: apply layers, then RMSNorm(dim=1024)."""

    def __init__(self, layers, dim=1024, eps=1e-6, small_rows_threshold=256):
        self.layers = layers
        self.dim = dim
        self.eps = eps
        self.small_rows_threshold = small_rows_threshold
        # nn.Parameter(torch.ones(dim)) -- deterministic init.
        self.norm_weight = jnp.ones((dim,), dtype=jnp.float32)

    def __call__(self, x, encoder_output, src_mask, tgt_mask):
        for layer in self.layers:
            x = layer(x, encoder_output, src_mask, tgt_mask)
        return rmsnorm_pallas(x, self.norm_weight, eps=self.eps,
                              small_rows_threshold=self.small_rows_threshold)


# --------------------------------- Demo -----------------------------------

if __name__ == "__main__":
    key = jax.random.PRNGKey(0)
    k_x, k_enc = jax.random.split(key)

    batch, seq, dim = 2, 8, 1024  # dim fixed to 1024 by RMSNorm default
    x = jax.random.normal(k_x, (batch, seq, dim), dtype=jnp.float32)
    encoder_output = jax.random.normal(k_enc, (batch, seq, dim), dtype=jnp.float32)
    src_mask = jnp.ones((batch, 1, seq, seq), dtype=jnp.float32)
    tgt_mask = jnp.tril(jnp.ones((seq, seq), dtype=jnp.float32))[None, None]

    # Example opaque decoder layers (stand-ins for the nn.ModuleList contents).
    def layer0(x, enc, src_mask, tgt_mask):
        return x + 0.1 * jnp.tanh(enc)

    def layer1(x, enc, src_mask, tgt_mask):
        return x + 0.05 * enc

    # small_rows_threshold=0 forces the Pallas kernel path even at this
    # demo-tiny row count (production default 256 uses the fused-XLA path
    # for decode-sized inputs).
    decoder = DecoderPallas(layers=[layer0, layer1], small_rows_threshold=0)

    forward = jax.jit(lambda a, b, c, d: decoder(a, b, c, d))
    out = jax.block_until_ready(forward(x, encoder_output, src_mask, tgt_mask))

    # Plain-JAX reference of the same forward (torch-matching rounding order).
    ref = x
    for layer in [layer0, layer1]:
        ref = layer(ref, encoder_output, src_mask, tgt_mask)
    ref32 = ref.astype(jnp.float32)
    ref_norm = ref32 * jax.lax.rsqrt(
        jnp.mean(ref32 * ref32, axis=-1, keepdims=True) + 1e-6
    )
    ref_out = (jnp.ones((dim,), jnp.float32) *
               ref_norm.astype(ref.dtype).astype(jnp.float32)).astype(
                   jnp.result_type(ref.dtype, jnp.float32))

    assert out.shape == (batch, seq, dim), out.shape
    assert out.dtype == ref_out.dtype, (out.dtype, ref_out.dtype)
    assert jnp.allclose(out, ref_out, atol=1e-5, rtol=1e-5), float(
        jnp.max(jnp.abs(out - ref_out))
    )

    print("KERNEL_OK")
</pallas_src>

<mosaic_0001>
module attributes {stable_mosaic.version = 11 : i64} {
  func.func @_rmsnorm_kernel(%arg0: i32, %arg1: memref<8x1024xf32, #tpu.memory_space<vmem>>, %arg2: memref<1x1024xf32, #tpu.memory_space<vmem>>, %arg3: memref<8x1024xf32, #tpu.memory_space<vmem>>) attributes {dimension_semantics = [#tpu.dimension_semantics<parallel>], iteration_bounds = array<i64: 2>, scalar_prefetch = 0 : i64, scratch_operands = 0 : i64, tpu.core_type = #tpu.core_type<tc>, window_params = [{transform_indices = @transform_0, window_bounds = array<i64: 8, 1024>}, {pipeline_mode = #tpu.pipeline_mode<synchronous>, transform_indices = @transform_1, window_bounds = array<i64: 1, 1024>}, {transform_indices = @transform_2, window_bounds = array<i64: 8, 1024>}]} {
    %c0 = arith.constant 0 : index
    %c0_0 = arith.constant 0 : index
    %0 = vector.load %arg1[%c0, %c0_0] : memref<8x1024xf32, #tpu.memory_space<vmem>>, vector<8x1024xf32>
    %1 = arith.mulf %0, %0 : vector<8x1024xf32>
    %cst = arith.constant dense<0.000000e+00> : vector<8xf32>
    %2 = vector.multi_reduction <add>, %1, %cst [1] : vector<8x1024xf32> to vector<8xf32>
    %3 = vector.shape_cast %2 : vector<8xf32> to vector<8x1xf32>
    %cst_1 = arith.constant 1.024000e+03 : f32
    %4 = vector.broadcast %cst_1 : f32 to vector<8x1xf32>
    %5 = arith.divf %3, %4 : vector<8x1xf32>
    %cst_2 = arith.constant 9.99999997E-7 : f32
    %6 = vector.broadcast %cst_2 : f32 to vector<8x1xf32>
    %7 = arith.addf %5, %6 : vector<8x1xf32>
    %8 = math.rsqrt %7 : vector<8x1xf32>
    %9 = vector.broadcast %8 : vector<8x1xf32> to vector<8x1024xf32>
    %10 = arith.mulf %0, %9 : vector<8x1024xf32>
    %c0_3 = arith.constant 0 : index
    %c0_4 = arith.constant 0 : index
    %11 = vector.load %arg2[%c0_3, %c0_4] : memref<1x1024xf32, #tpu.memory_space<vmem>>, vector<1x1024xf32>
    %12 = vector.broadcast %11 : vector<1x1024xf32> to vector<8x1024xf32>
    %13 = arith.mulf %12, %10 : vector<8x1024xf32>
    %c0_5 = arith.constant 0 : index
    %c0_6 = arith.constant 0 : index
    %14 = vector.load %arg3[%c0_5, %c0_6] : memref<8x1024xf32, #tpu.memory_space<vmem>>, vector<8x1024xf32>
    tpu.vector_store %arg3[%c0_5, %c0_6], %13 {strides = array<i32>} : memref<8x1024xf32, #tpu.memory_space<vmem>>, vector<8x1024xf32>,
    return
  }
  func.func @transform_0(%arg0: i32) -> (i32, i32) {
    %c0_i32 = arith.constant 0 : i32
    %c0_i32_0 = arith.constant 0 : i32
    return %arg0, %c0_i32 : i32, i32
  }
  func.func @transform_1(%arg0: i32) -> (i32, i32) {
    %c0_i32 = arith.constant 0 : i32
    %c0_i32_0 = arith.constant 0 : i32
    %c0_i32_1 = arith.constant 0 : i32
    return %c0_i32, %c0_i32_0 : i32, i32
  }
  func.func @transform_2(%arg0: i32) -> (i32, i32) {
    %c0_i32 = arith.constant 0 : i32
    %c0_i32_0 = arith.constant 0 : i32
    return %arg0, %c0_i32 : i32, i32
  }
}

</mosaic_0001>

<llo_original>
// kernel: _lambda_.2
$region0: #{_lambda_.2}
  #allocation0 [shape = 'u32[]', space=smem, size = 0x4, offset = 0x4, fixed_abs, tag = 'smem constant byte address 0x4 - core index']
  #allocation1 [shape = 'u32[144,128]{1,0:T(1,128)}', space=vmem, size = 0x12000, scoped, tag = 'internal scratch']
  %s0 = inlined_call_operand.vmem [shape: f32[1,1024], index: 0, kind: input, shape index: {}]
  %s1 = inlined_call_operand.hbm [shape: f32[2,8,1024], index: 1, kind: input, shape index: {}]
  %s2 = inlined_call_operand.hbm [shape: f32[2,8,1024], index: 2, kind: input, shape index: {}]
  %s3 = inlined_call_operand.<no memory space> [shape: f32[], index: 3, kind: input, shape index: {}]
  %s4 = inlined_call_operand.<no memory space> [shape: f32[], index: 4, kind: input, shape index: {}]
  %s5 = inlined_call_operand.hbm [shape: f32[16,1024], index: 5, kind: output, shape index: {}]
  %s6 = sld [smem:[#allocation0]]
  $region53: #{_lambda_.2} parent=0
    _
  %s8 = ssub.s32 1, %s6
  %s9 = scalar_select 0, %s8, %s6
  %v10 = vstv %s3
  %v11 = vstv %s4
  $region1: #{_lambda_.2} parent=0
    #allocation2 [shape = 'u8[65536]{0}', space=vmem, size = 0x10000, scoped, tag = 'operand span for operand 1']
    #allocation3 [shape = 's32[2]{0}', space=sflag, size = 0x8, scoped, tag = 'scoped memory for _lambda_.2']
    #allocation4 [shape = 's32[2]{0}', space=sflag, size = 0x8, scoped, tag = 'scoped memory for _lambda_.2']
    #allocation5 [shape = 'u8[65536]{0}', space=vmem, size = 0x10000, scoped, tag = 'operand span for operand 2']
    #allocation6 [shape = 's32[2]{0}', space=sflag, size = 0x8, scoped, tag = 'scoped memory for _lambda_.2']
    #allocation7 [shape = 'u8[65536]{0}', space=vmem, size = 0x10000, scoped, tag = 'output window, operand 0']
    %12 = vsyncpa [#allocation3], 0
    %s13 = scalar_lea.sflag [#allocation3], 1
    %14 = vsyncpa %s13, 0
    %15 = vsyncpa [#allocation6], 0
    %s16 = scalar_lea.sflag [#allocation6], 1
    %17 = vsyncpa %s16, 0
    %18 = vsyncpa [#allocation4], 0
    %s19 = scalar_lea.sflag [#allocation4], 1
    %20 = vsyncpa %s19, 0
    loop: start=0, step=1, limit=4
    $region2: #{_lambda_.2} parent=1 // loop_pre_header
      _
    $region3: #{_lambda_.2} parent=1 // loop_header
      %s22 = sphi 0, %s26
      %p23 = scmp.ge.s32.totalorder %s22, 4
      %s32 = sphi 0, %s34
      %s35 = sphi 0, %s32
      %s36 = sphi 0, %s35
      %s52 = sphi 0, %s36
      %s58 = sphi 0, %s60
      %s61 = sphi 0, %s58
      %s62 = sphi 0, %s61
      %s78 = sphi 0, %s62
      %s82 = sphi 0, %s82
      %s84 = sphi 0, %s82
      %s85 = sphi 0, %s84
      %s99 = sphi 0, %s85
      %s105 = sphi 0, %s107
      %s108 = sphi 0, %s105
      %s109 = sphi 0, %s108
      %s125 = sphi 0, %s109
    $region4: #{_lambda_.2} parent=1 // loop_header_branch
      %25 = sbr.rel (%p23) target = $region8
    $region5: #{_lambda_.2} parent=1 // loop_body
      %s27 = ssub.s32 %s22, 1
      %s28 = ssub.s32 %s22, 2
      %s29 = sadd.s32 %s22, 1
      %s30 = ssub.s32 %s22, %s29
      %p31 = scmp.eq.s32.totalorder %s30, 0
      %s33 = sadd.s32 %s32, 1
      %s34 = scalar_select %p31, %s32, %s33
      %p37 = pneg %p31
      %p38 = scmp.eq.s32.totalorder %s22, 1
      %p39 = por %p37, %p38
      %p40 = scmp.ne.s32.totalorder %s32, %s35
      %p41 = scmp.eq.s32.totalorder %s22, 0
      %p42 = por %p40, %p41
      %p43 = scmp.ne.s32.totalorder %s32, %s35
      %p44 = scmp.eq.s32.totalorder %s27, 1
      %p45 = por %p43, %p44
      %p46 = scmp.ne.s32.totalorder %s35, %s36
      %p47 = scmp.eq.s32.totalorder %s27, 0
      %p48 = por %p46, %p47
      %p49 = scmp.ne.s32.totalorder %s35, %s36
      %p50 = scmp.eq.s32.totalorder %s28, 1
      %p51 = por %p49, %p50
      %p53 = scmp.ne.s32.totalorder %s36, %s52
      %p54 = scmp.eq.s32.totalorder %s28, 0
      %p55 = por %p53, %p54
      %s56 = ssub.s32 %s22, %s29
      %p57 = scmp.eq.s32.totalorder %s56, 0
      %s59 = sadd.s32 %s58, 1
      %s60 = scalar_select %p57, %s58, %s59
      %p63 = pneg %p57
      %p64 = scmp.eq.s32.totalorder %s22, 1
      %p65 = por %p63, %p64
      %p66 = scmp.ne.s32.totalorder %s58, %s61
      %p67 = scmp.eq.s32.totalorder %s22, 0
      %p68 = por %p66, %p67
      %p69 = scmp.ne.s32.totalorder %s58, %s61
      %p70 = scmp.eq.s32.totalorder %s27, 1
      %p71 = por %p69, %p70
      %p72 = scmp.ne.s32.totalorder %s61, %s62
      %p73 = scmp.eq.s32.totalorder %s27, 0
      %p74 = por %p72, %p73
      %p75 = scmp.ne.s32.totalorder %s61, %s62
      %p76 = scmp.eq.s32.totalorder %s28, 1
      %p77 = por %p75, %p76
      %p79 = scmp.ne.s32.totalorder %s62, %s78
      %p80 = scmp.eq.s32.totalorder %s28, 0
      %p81 = por %p79, %p80
      %s83 = sadd.s32 %s82, 1
      %p86 = scmp.eq.s32.totalorder %s22, 1
      %p87 = scmp.ne.s32.totalorder %s82, %s84
      %p88 = scmp.eq.s32.totalorder %s22, 0
      %p89 = por %p87, %p88
      %p90 = scmp.ne.s32.totalorder %s82, %s84
      %p91 = scmp.eq.s32.totalorder %s27, 1
      %p92 = por %p90, %p91
      %p93 = scmp.ne.s32.totalorder %s84, %s85
      %p94 = scmp.eq.s32.totalorder %s27, 0
      %p95 = por %p93, %p94
      %p96 = scmp.ne.s32.totalorder %s84, %s85
      %p97 = scmp.eq.s32.totalorder %s28, 1
      %p98 = por %p96, %p97
      %p100 = scmp.ne.s32.totalorder %s85, %s99
      %p101 = scmp.eq.s32.totalorder %s28, 0
      %p102 = por %p100, %p101
      %s103 = ssub.s32 %s22, %s29
      %p104 = scmp.eq.s32.totalorder %s103, 0
      %s106 = sadd.s32 %s105, 1
      %s107 = scalar_select %p104, %s105, %s106
      %p110 = pneg %p104
      %p111 = scmp.eq.s32.totalorder %s22, 1
      %p112 = por %p110, %p111
      %p113 = scmp.ne.s32.totalorder %s105, %s108
      %p114 = scmp.eq.s32.totalorder %s22, 0
      %p115 = por %p113, %p114
      %p116 = scmp.ne.s32.totalorder %s105, %s108
      %p117 = scmp.eq.s32.totalorder %s27, 1
      %p118 = por %p116, %p117
      %p119 = scmp.ne.s32.totalorder %s108, %s109
      %p120 = scmp.eq.s32.totalorder %s27, 0
      %p121 = por %p119, %p120
      %p122 = scmp.ne.s32.totalorder %s108, %s109
      %p123 = scmp.eq.s32.totalorder %s28, 1
      %p124 = por %p122, %p123
      %p126 = scmp.ne.s32.totalorder %s109, %s125
      %p127 = scmp.eq.s32.totalorder %s28, 0
      %p128 = por %p126, %p127
      %p129 = scmp.le.s32.totalorder 1, %s22
      %p130 = scmp.lt.s32.totalorder %s22, 3
      %p131 = pnand %p129, %p130
      %p132 = pneg %p131
      // Predicated region
      $region9: #{_lambda_.2} parent=5 // pred_check
        _
      $region10: #{_lambda_.2} parent=5 // pred_check_branch
        %134 = sbr.rel (%p131) target = $region12
      $region11: #{_lambda_.2} parent=5 // pred_region
        %s135 = ssub.s32 %s22, 1
        // Predicated region
        $region13: #{_lambda_.2} parent=11 // pred_check
          %p136 = pneg %p95
        $region14: #{_lambda_.2} parent=11 // pred_check_branch
          %138 = sbr.rel (%p136) target = $region16
        $region15: #{_lambda_.2} parent=11 // pred_region
          _
        $region16: #{_lambda_.2} parent=11 // pred_fallthru
          _
      $region12: #{_lambda_.2} parent=5 // pred_fallthru
        _
      %p139 = scmp.lt.s32.totalorder %s22, 2
      // Predicated region
      $region17: #{_lambda_.2} parent=5 // pred_check
        %p140 = pneg %p139
      $region18: #{_lambda_.2} parent=5 // pred_check_branch
        %142 = sbr.rel (%p140) target = $region20
      $region19: #{_lambda_.2} parent=5 // pred_region
        // Predicated region
        $region21: #{_lambda_.2} parent=19 // pred_check
          %p143 = pneg %p42
        $region22: #{_lambda_.2} parent=19 // pred_check_branch
          %145 = sbr.rel (%p143) target = $region24
        $region23: #{_lambda_.2} parent=19 // pred_region
          %s146 = sand.u32 %s32, 1
          %s147 = scalar_lea.sflag [#allocation3], %s146
          %s148 = sand.u32 %s32, 1
          %s149 = smul.addr %s148, 64
          %s150 = scalar_lea.vmem [#allocation2], %s149
          %s152 = ssub.s32 1024, 1024
          %153 = vsyncadd %s147, %s152
          %s154 = smul.addr %s22, 8
          %s155 = smul.addr %s154, 128
          %s156 = scalar_lea.hbm %s1, %s155
          %s158 = sshll.u32 %s150, 4
          %s159 = int_to_ptr.vmem [resolvable:$true] %s158
          %161 = dma.hbm_to_vmem [thread:$0]  %s156, 1024, %s159, %s147
        $region24: #{_lambda_.2} parent=19 // pred_fallthru
          _
        // Predicated region
        $region25: #{_lambda_.2} parent=19 // pred_check
          %p162 = pneg %p68
        $region26: #{_lambda_.2} parent=19 // pred_check_branch
          %164 = sbr.rel (%p162) target = $region28
        $region27: #{_lambda_.2} parent=19 // pred_region
          %s165 = sand.u32 %s58, 1
          %s166 = scalar_lea.sflag [#allocation6], %s165
          %s167 = sand.u32 %s58, 1
          %s168 = smul.addr %s167, 64
          %s169 = scalar_lea.vmem [#allocation5], %s168
          %s171 = ssub.s32 1024, 1024
          %172 = vsyncadd %s166, %s171
          %s173 = smul.addr %s22, 8
          %s174 = smul.addr %s173, 128
          %s175 = scalar_lea.hbm %s2, %s174
          %s177 = sshll.u32 %s169, 4
          %s178 = int_to_ptr.vmem [resolvable:$true] %s177
          %180 = dma.hbm_to_vmem [thread:$0]  %s175, 1024, %s178, %s166
        $region28: #{_lambda_.2} parent=19 // pred_fallthru
          _
      $region20: #{_lambda_.2} parent=5 // pred_fallthru
        _
      %p181 = scmp.le.s32.totalorder 1, %s22
      %p182 = scmp.lt.s32.totalorder %s22, 3
      %p183 = pnand %p181, %p182
      %p184 = pneg %p183
      // Predicated region
      $region29: #{_lambda_.2} parent=5 // pred_check
        _
      $region30: #{_lambda_.2} parent=5 // pred_check_branch
        %186 = sbr.rel (%p183) target = $region32
      $region31: #{_lambda_.2} parent=5 // pred_region
        #allocation8 [shape = 'u8[32768]{0}', space=vmem, size = 0x8000, dematerialized = true, scoped, tag = 'FusionAdapter Buffer %fusion.1 = f32[16,1024]{1,0:T(8,128)} fusion(%param_1.9, %param_2.5, %param_3.6, %param_4.5), kind=kLoop, calls=%fused_computation.1.clone, metadata={op_name="jit(<lambda>)/reshape" stack_frame_id=16}']
        %s187 = ssub.s32 %s22, 1
        %s188 = sand.u32 %s35, 1
        %s189 = scalar_lea.sflag [#allocation3], %s188
        %s190 = sand.u32 %s35, 1
        %s191 = smul.addr %s190, 64
        %s192 = scalar_lea.vmem [#allocation2], %s191
        // Predicated region
        $region33: #{_lambda_.2} parent=31 // pred_check
          %p193 = pneg %p48
        $region34: #{_lambda_.2} parent=31 // pred_check_branch
          %195 = sbr.rel (%p193) target = $region36
        $region35: #{_lambda_.2} parent=31 // pred_region
          %196 = dma.done %s189, 1024
        $region36: #{_lambda_.2} parent=31 // pred_fallthru
          _
        %s197 = sand.u32 %s61, 1
        %s198 = scalar_lea.sflag [#allocation6], %s197
        %s199 = sand.u32 %s61, 1
        %s200 = smul.addr %s199, 64
        %s201 = scalar_lea.vmem [#allocation5], %s200
        // Predicated region
        $region37: #{_lambda_.2} parent=31 // pred_check
          %p202 = pneg %p74
        $region38: #{_lambda_.2} parent=31 // pred_check_branch
          %204 = sbr.rel (%p202) target = $region40
        $region39: #{_lambda_.2} parent=31 // pred_region
          %205 = dma.done %s198, 1024
        $region40: #{_lambda_.2} parent=31 // pred_fallthru
          _
        %s206 = sand.u32 %s35, 1
        %s207 = scalar_lea.sflag [#allocation3], %s206
        %s208 = sand.u32 %s35, 1
        %s209 = smul.addr %s208, 64
        %s210 = scalar_lea.vmem [#allocation2], %s209
        %p211 = pneg %p48
        %p212 = pneg %p45
        %s213 = sand.u32 %s61, 1
        %s214 = scalar_lea.sflag [#allocation6], %s213
        %s215 = sand.u32 %s61, 1
        %s216 = smul.addr %s215, 64
        %s217 = scalar_lea.vmem [#allocation5], %s216
        %p218 = pneg %p74
        %p219 = pneg %p71
        %p220 = pneg %p95
        %p221 = pneg %p92
        %p222 = pneg %p121
        %p223 = pneg %p118
        %s224 = sand.u32 %s108, 1
        %s225 = scalar_lea.sflag [#allocation4], %s224
        %s226 = sand.u32 %s108, 1
        %s227 = smul.addr %s226, 64
        %s228 = scalar_lea.vmem [#allocation7], %s227
        %v229 = vld [vmem:[%s192] sm:$0xff]
        %v230 = vld [vmem:[%s201] sm:$0xff]
        %231 = xla_tuple %v229
        %232 = xla_tuple %231
        %v233 = vtanh.pop %v229
        %234 = xla_tuple %v233
        %235 = xla_tuple %v233, %v10
        %236 = xla_tuple %235
        %v237 = vmul.f32 %v233, %v10
        %238 = xla_tuple %v237
        %239 = xla_tuple %v230, %v237
        %240 = xla_tuple %239
        %v241 = vadd.f32 %v230, %v237
        %242 = xla_tuple %v241
        %243 = xla_tuple %v229, %v11
        %244 = xla_tuple %243
        %v245 = vmul.f32 %v229, %v11
        %246 = xla_tuple %v245
        %247 = xla_tuple %v241, %v245
        %248 = xla_tuple %247
        %v249 = vadd.f32 %v241, %v245
        %250 = xla_tuple %v249
        %252 = vst [vmem:[#allocation8] sm:$0xff] %v249
        %s253 = scalar_lea.vmem %s192, 8 [#allocation2]
        %v254 = vld [vmem:[%s253] sm:$0xff]
        %s255 = scalar_lea.vmem %s201, 8 [#allocation5]
        %v256 = vld [vmem:[%s255] sm:$0xff]
        %s257 = scalar_lea.vmem %s192, 8 [#allocation2]
        %258 = xla_tuple %v254
        %259 = xla_tuple %258
        %v260 = vtanh.pop %v254
        %261 = xla_tuple %v260
        %262 = xla_tuple %v260, %v10
        %263 = xla_tuple %262
        %v264 = vmul.f32 %v260, %v10
        %265 = xla_tuple %v264
        %266 = xla_tuple %v256, %v264
        %267 = xla_tuple %266
        %v268 = vadd.f32 %v256, %v264
        %269 = xla_tuple %v268
        %270 = xla_tuple %v254, %v11
        %271 = xla_tuple %270
        %v272 = vmul.f32 %v254, %v11
        %273 = xla_tuple %v272
        %274 = xla_tuple %v268, %v272
        %275 = xla_tuple %274
        %v276 = vadd.f32 %v268, %v272
        %277 = xla_tuple %v276
        %s278 = scalar_lea.vmem [#allocation8], 8
        %280 = vst [vmem:[%s278] sm:$0xff] %v276
        %s281 = scalar_lea.vmem %s192, 16 [#allocation2]
        %v282 = vld [vmem:[%s281] sm:$0xff]
        %s283 = scalar_lea.vmem %s201, 16 [#allocation5]
        %v284 = vld [vmem:[%s283] sm:$0xff]
        %s285 = scalar_lea.vmem %s192, 16 [#allocation2]
        %286 = xla_tuple %v282
        %287 = xla_tuple %286
        %v288 = vtanh.pop %v282
        %289 = xla_tuple %v288
        %290 = xla_tuple %v288, %v10
        %291 = xla_tuple %290
        %v292 = vmul.f32 %v288, %v10
        %293 = xla_tuple %v292
        %294 = xla_tuple %v284, %v292
        %295 = xla_tuple %294
        %v296 = vadd.f32 %v284, %v292
        %297 = xla_tuple %v296
        %298 = xla_tuple %v282, %v11
        %299 = xla_tuple %298
        %v300 = vmul.f32 %v282, %v11
        %301 = xla_tuple %v300
        %302 = xla_tuple %v296, %v300
        %303 = xla_tuple %302
        %v304 = vadd.f32 %v296, %v300
        %305 = xla_tuple %v304
        %s306 = scalar_lea.vmem [#allocation8], 16
        %308 = vst [vmem:[%s306] sm:$0xff] %v304
        %s309 = scalar_lea.vmem %s192, 24 [#allocation2]
        %v310 = vld [vmem:[%s309] sm:$0xff]
        %s311 = scalar_lea.vmem %s201, 24 [#allocation5]
        %v312 = vld [vmem:[%s311] sm:$0xff]
        %s313 = scalar_lea.vmem %s192, 24 [#allocation2]
        %314 = xla_tuple %v310
        %315 = xla_tuple %314
        %v316 = vtanh.pop %v310
        %317 = xla_tuple %v316
        %318 = xla_tuple %v316, %v10
        %319 = xla_tuple %318
        %v320 = vmul.f32 %v316, %v10
        %321 = xla_tuple %v320
        %322 = xla_tuple %v312, %v320
        %323 = xla_tuple %322
        %v324 = vadd.f32 %v312, %v320
        %325 = xla_tuple %v324
        %326 = xla_tuple %v310, %v11
        %327 = xla_tuple %326
        %v328 = vmul.f32 %v310, %v11
        %329 = xla_tuple %v328
        %330 = xla_tuple %v324, %v328
        %331 = xla_tuple %330
        %v332 = vadd.f32 %v324, %v328
        %333 = xla_tuple %v332
        %s334 = scalar_lea.vmem [#allocation8], 24
        %336 = vst [vmem:[%s334] sm:$0xff] %v332
        %s337 = scalar_lea.vmem %s192, 32 [#allocation2]
        %v338 = vld [vmem:[%s337] sm:$0xff]
        %s339 = scalar_lea.vmem %s201, 32 [#allocation5]
        %v340 = vld [vmem:[%s339] sm:$0xff]
        %s341 = scalar_lea.vmem %s192, 32 [#allocation2]
        %342 = xla_tuple %v338
        %343 = xla_tuple %342
        %v344 = vtanh.pop %v338
        %345 = xla_tuple %v344
        %346 = xla_tuple %v344, %v10
        %347 = xla_tuple %346
        %v348 = vmul.f32 %v344, %v10
        %349 = xla_tuple %v348
        %350 = xla_tuple %v340, %v348
        %351 = xla_tuple %350
        %v352 = vadd.f32 %v340, %v348
        %353 = xla_tuple %v352
        %354 = xla_tuple %v338, %v11
        %355 = xla_tuple %354
        %v356 = vmul.f32 %v338, %v11
        %357 = xla_tuple %v356
        %358 = xla_tuple %v352, %v356
        %359 = xla_tuple %358
        %v360 = vadd.f32 %v352, %v356
        %361 = xla_tuple %v360
        %s362 = scalar_lea.vmem [#allocation8], 32
        %364 = vst [vmem:[%s362] sm:$0xff] %v360
        %s365 = scalar_lea.vmem %s192, 40 [#allocation2]
        %v366 = vld [vmem:[%s365] sm:$0xff]
        %s367 = scalar_lea.vmem %s201, 40 [#allocation5]
        %v368 = vld [vmem:[%s367] sm:$0xff]
        %s369 = scalar_lea.vmem %s192, 40 [#allocation2]
        %370 = xla_tuple %v366
        %371 = xla_tuple %370
        %v372 = vtanh.pop %v366
        %373 = xla_tuple %v372
        %374 = xla_tuple %v372, %v10
        %375 = xla_tuple %374
        %v376 = vmul.f32 %v372, %v10
        %377 = xla_tuple %v376
        %378 = xla_tuple %v368, %v376
        %379 = xla_tuple %378
        %v380 = vadd.f32 %v368, %v376
        %381 = xla_tuple %v380
        %382 = xla_tuple %v366, %v11
        %383 = xla_tuple %382
        %v384 = vmul.f32 %v366, %v11
        %385 = xla_tuple %v384
        %386 = xla_tuple %v380, %v384
        %387 = xla_tuple %386
        %v388 = vadd.f32 %v380, %v384
        %389 = xla_tuple %v388
        %s390 = scalar_lea.vmem [#allocation8], 40
        %392 = vst [vmem:[%s390] sm:$0xff] %v388
        %s393 = scalar_lea.vmem %s192, 48 [#allocation2]
        %v394 = vld [vmem:[%s393] sm:$0xff]
        %s395 = scalar_lea.vmem %s201, 48 [#allocation5]
        %v396 = vld [vmem:[%s395] sm:$0xff]
        %s397 = scalar_lea.vmem %s192, 48 [#allocation2]
        %398 = xla_tuple %v394
        %399 = xla_tuple %398
        %v400 = vtanh.pop %v394
        %401 = xla_tuple %v400
        %402 = xla_tuple %v400, %v10
        %403 = xla_tuple %402
        %v404 = vmul.f32 %v400, %v10
        %405 = xla_tuple %v404
        %406 = xla_tuple %v396, %v404
        %407 = xla_tuple %406
        %v408 = vadd.f32 %v396, %v404
        %409 = xla_tuple %v408
        %410 = xla_tuple %v394, %v11
        %411 = xla_tuple %410
        %v412 = vmul.f32 %v394, %v11
        %413 = xla_tuple %v412
        %414 = xla_tuple %v408, %v412
        %415 = xla_tuple %414
        %v416 = vadd.f32 %v408, %v412
        %417 = xla_tuple %v416
        %s418 = scalar_lea.vmem [#allocation8], 48
        %420 = vst [vmem:[%s418] sm:$0xff] %v416
        %s421 = scalar_lea.vmem %s192, 56 [#allocation2]
        %v422 = vld [vmem:[%s421] sm:$0xff]
        %s423 = scalar_lea.vmem %s201, 56 [#allocation5]
        %v424 = vld [vmem:[%s423] sm:$0xff]
        %s425 = scalar_lea.vmem %s192, 56 [#allocation2]
        %426 = xla_tuple %v422
        %427 = xla_tuple %426
        %v428 = vtanh.pop %v422
        %429 = xla_tuple %v428
        %430 = xla_tuple %v428, %v10
        %431 = xla_tuple %430
        %v432 = vmul.f32 %v428, %v10
        %433 = xla_tuple %v432
        %434 = xla_tuple %v424, %v432
        %435 = xla_tuple %434
        %v436 = vadd.f32 %v424, %v432
        %437 = xla_tuple %v436
        %438 = xla_tuple %v422, %v11
        %439 = xla_tuple %438
        %v440 = vmul.f32 %v422, %v11
        %441 = xla_tuple %v440
        %442 = xla_tuple %v436, %v440
        %443 = xla_tuple %442
        %v444 = vadd.f32 %v436, %v440
        %445 = xla_tuple %v444
        %s446 = scalar_lea.vmem [#allocation8], 56
        %448 = vst [vmem:[%s446] sm:$0xff] %v444
        %v449 = vld [vmem:[#allocation8] sm:$0xff]
        %v450 = vld [vmem:[#allocation8 + $0x8] sm:$0xff]
        %v451 = vld [vmem:[#allocation8 + $0x10] sm:$0xff]
        %v452 = vld [vmem:[#allocation8 + $0x18] sm:$0xff]
        %v453 = vld [vmem:[#allocation8 + $0x20] sm:$0xff]
        %v454 = vld [vmem:[#allocation8 + $0x28] sm:$0xff]
        %v455 = vld [vmem:[#allocation8 + $0x30] sm:$0xff]
        %v456 = vld [vmem:[#allocation8 + $0x38] sm:$0xff]
        %v457 = vmul.f32 %v449, %v449
        %v458 = vmul.f32 %v450, %v450
        %v459 = vmul.f32 %v451, %v451
        %v460 = vmul.f32 %v452, %v452
        %v461 = vmul.f32 %v453, %v453
        %v462 = vmul.f32 %v454, %v454
        %v463 = vmul.f32 %v455, %v455
        %v464 = vmul.f32 %v456, %v456
        %v465 = vadd.f32 %v457, %v458
        %v466 = vadd.f32 %v465, %v459
        %v467 = vadd.f32 %v466, %v460
        %v468 = vadd.f32 %v467, %v461
        %v469 = vadd.f32 %v468, %v462
        %v470 = vadd.f32 %v469, %v463
        %v471 = vadd.f32 %v470, %v464
        %472 = vadd.xlane.f32.xlu0 %v471
        %v473 = vpop.xlane.xlu0 %472
        %v474 = vrcp.pop 1024.0
        %v475 = vmul.f32 %v473, %v474
        %v476 = vadd.f32 %v475, 1e-06
        %v477 = vrsqrt.pop %v476
        %v478 = vmul.f32 %v449, %v477
        %v479 = vmul.f32 %v450, %v477
        %v480 = vmul.f32 %v451, %v477
        %v481 = vmul.f32 %v452, %v477
        %v482 = vmul.f32 %v453, %v477
        %v483 = vmul.f32 %v454, %v477
        %v484 = vmul.f32 %v455, %v477
        %v485 = vmul.f32 %v456, %v477
        %v486 = vld [vmem:[%s0] sm:$0xff]
        %v488 = vlaneseq
        %v489 = vshrl.u32 %v488, 7
        %v490 = vsub.s32 0, %v489
        %v491 = vrot.slane %v486, %v490
        %v492 = vlaneseq
        %v493 = vshrl.u32 %v492, 7
        %v494 = vsub.s32 1, %v493
        %v495 = vrot.slane %v486, %v494
        %v496 = vlaneseq
        %v497 = vshrl.u32 %v496, 7
        %v498 = vsub.s32 2, %v497
        %v499 = vrot.slane %v486, %v498
        %v500 = vlaneseq
        %v501 = vshrl.u32 %v500, 7
        %v502 = vsub.s32 3, %v501
        %v503 = vrot.slane %v486, %v502
        %v504 = vlaneseq
        %v505 = vshrl.u32 %v504, 7
        %v506 = vsub.s32 4, %v505
        %v507 = vrot.slane %v486, %v506
        %v508 = vlaneseq
        %v509 = vshrl.u32 %v508, 7
        %v510 = vsub.s32 5, %v509
        %v511 = vrot.slane %v486, %v510
        %v512 = vlaneseq
        %v513 = vshrl.u32 %v512, 7
        %v514 = vsub.s32 6, %v513
        %v515 = vrot.slane %v486, %v514
        %v516 = vlaneseq
        %v517 = vshrl.u32 %v516, 7
        %v518 = vsub.s32 7, %v517
        %v519 = vrot.slane %v486, %v518
        %v528 = vmul.f32 %v491, %v478
        %v529 = vmul.f32 %v495, %v479
        %v530 = vmul.f32 %v499, %v480
        %v531 = vmul.f32 %v503, %v481
        %v532 = vmul.f32 %v507, %v482
        %v533 = vmul.f32 %v511, %v483
        %v534 = vmul.f32 %v515, %v484
        %v535 = vmul.f32 %v519, %v485
        %536 = vst [vmem:[%s228] sm:$0xff] %v528
        %537 = vst [vmem:[%s228 + $0x8] sm:$0xff] %v529
        %538 = vst [vmem:[%s228 + $0x10] sm:$0xff] %v530
        %539 = vst [vmem:[%s228 + $0x18] sm:$0xff] %v531
        %540 = vst [vmem:[%s228 + $0x20] sm:$0xff] %v532
        %541 = vst [vmem:[%s228 + $0x28] sm:$0xff] %v533
        %542 = vst [vmem:[%s228 + $0x30] sm:$0xff] %v534
        %543 = vst [vmem:[%s228 + $0x38] sm:$0xff] %v535
        %s544 = sand.u32 %s108, 1
        %s545 = scalar_lea.sflag [#allocation4], %s544
        %s546 = sand.u32 %s108, 1
        %s547 = smul.addr %s546, 64
        %s548 = scalar_lea.vmem [#allocation7], %s547
        // Predicated region
        $region41: #{_lambda_.2} parent=31 // pred_check
          %p549 = pneg %p118
        $region42: #{_lambda_.2} parent=31 // pred_check_branch
          %551 = sbr.rel (%p549) target = $region44
        $region43: #{_lambda_.2} parent=31 // pred_region
          %s553 = ssub.s32 1024, 1024
          %554 = vsyncadd %s545, %s553
          %s555 = smul.addr %s27, 8
          %s556 = smul.addr %s555, 128
          %s557 = scalar_lea.hbm %s5, %s556
          %s559 = sshll.u32 %s548, 4
          %s560 = int_to_ptr.vmem [resolvable:$true] %s559
          %562 = dma.vmem_to_hbm [thread:$0]  %s560, 1024, %s557, %s545
        $region44: #{_lambda_.2} parent=31 // pred_fallthru
          _
      $region32: #{_lambda_.2} parent=5 // pred_fallthru
        _
      %p563 = scmp.le.s32.totalorder 2, %s22
      // Predicated region
      $region45: #{_lambda_.2} parent=5 // pred_check
        %p564 = pneg %p563
      $region46: #{_lambda_.2} parent=5 // pred_check_branch
        %566 = sbr.rel (%p564) target = $region48
      $region47: #{_lambda_.2} parent=5 // pred_region
        %s567 = ssub.s32 %s22, 2
        // Predicated region
        $region49: #{_lambda_.2} parent=47 // pred_check
          %p568 = pneg %p124
        $region50: #{_lambda_.2} parent=47 // pred_check_branch
          %570 = sbr.rel (%p568) target = $region52
        $region51: #{_lambda_.2} parent=47 // pred_region
          %s571 = sand.u32 %s109, 1
          %s572 = scalar_lea.sflag [#allocation4], %s571
          %s573 = sand.u32 %s109, 1
          %s574 = smul.addr %s573, 64
          %s575 = scalar_lea.vmem [#allocation7], %s574
          %576 = dma.done %s572, 1024
        $region52: #{_lambda_.2} parent=47 // pred_fallthru
          _
      $region48: #{_lambda_.2} parent=5 // pred_fallthru
        _
    $region6: #{_lambda_.2} parent=1 // loop_footer
      %s26 = sadd.s32 1, %s22
    $region7: #{_lambda_.2} parent=1 // loop_footer_branch
      %21 = sbr.rel target = $region3
    $region8: #{_lambda_.2} parent=1 // loop_exit
      _
    %577 = vsyncpa [#allocation3], 1
    %s578 = scalar_lea.sflag [#allocation3], 1
    %579 = vsyncpa %s578, 1
    %580 = vsyncpa [#allocation6], 1
    %s581 = scalar_lea.sflag [#allocation6], 1
    %582 = vsyncpa %s581, 1
    %583 = vsyncpa [#allocation4], 1
    %s584 = scalar_lea.sflag [#allocation4], 1
    %585 = vsyncpa %s584, 1

</llo_original>
